<compile_context>
chip_gen: v7x
topology: tpu7x:2x2x1
jax: 0.10.0
libtpu: 0.0.40
codegen_flags: <defaults>
</compile_context>

<pallas_src>
import jax
import jax.numpy as jnp
from jax import lax
from jax.experimental import pallas as pl
from jax.experimental.pallas import tpu as pltpu


def _round_up(x, m):
    return ((x + m - 1) // m) * m


def _gram_kernel_1op(f_ref, g_ref):
    """Partial gram for one K split: G[s] += F_blk @ F_blk^T over the k axis."""
    k = pl.program_id(1)

    @pl.when(k == 0)
    def _():
        g_ref[...] = jnp.zeros_like(g_ref)

    blk = f_ref[...]
    # Transpose-free contraction of the K (lane) dim of the single operand with
    # itself: bf16 in, f32 accumulate.  Keeping `+=` on the resident output
    # block lets v7x use the MRB in-place accumulate.
    g_ref[...] += lax.dot_general(
        blk, blk,
        dimension_numbers=(((1,), (1,)), ((), ())),
        preferred_element_type=jnp.float32)[None]


def _gram_kernel_2op(fr_ref, fc_ref, g_ref):
    """Fallback tiled path (very large M): G[i,j] += F_rows(i) @ F_rows(j)^T."""
    k = pl.program_id(2)

    @pl.when(k == 0)
    def _():
        g_ref[...] = jnp.zeros_like(g_ref)

    g_ref[...] += lax.dot_general(
        fr_ref[...], fc_ref[...],
        dimension_numbers=(((1,), (1,)), ((), ())),
        preferred_element_type=jnp.float32)


@jax.jit
def gram_matrix_pallas(x):
    """Pallas equivalent of PyTorch gram_matrix(): (a,b,c,d) -> (a*b, a*b), f32."""
    a, b, c, d = x.shape
    M, K = a * b, c * d
    inv_norm = 1.0 / float(a * b * c * d)

    # bf16 operands for the MXU; accumulation stays f32 inside the kernel.
    f = x.reshape(M, K).astype(jnp.bfloat16)

    # ---- K tiling first, then pad K up to a multiple of tk -----------------
    nk = max(1, (K + 2047) // 2048)       # number of K steps with a 2048 cap
    if nk >= 2:
        nk = _round_up(nk, 2)             # even -> splittable across 2 cores
    tk = _round_up((K + nk - 1) // nk, 256)   # lane-/MXU-friendly step width
    K_pad = nk * tk

    # Fast path (F read once, full-M blocks) whenever M fits comfortably.
    fast = _round_up(M, 16) <= 1024
    tm = tn = 512                         # fallback output tile
    M_pad = _round_up(M, 16) if fast else _round_up(M, tm)

    pad_m, pad_k = M_pad - M, K_pad - K
    if pad_m or pad_k:                    # zero rows/cols don't change F @ F^T
        f = jnp.pad(f, ((0, pad_m), (0, pad_k)))

    if fast:
        # ---- single-operand, K-only grid: F streamed from HBM exactly once --
        n_split = 2 if nk >= 2 else 1     # split K across TensorCores on v7x
        k_per = nk // n_split

        f_idx = lambda s, k: (0, s * k_per + k)
        if nk >= 3:                       # deeper pipelining only when useful
            f_spec = pl.BlockSpec((M_pad, tk), f_idx, pipeline_mode=pl.Buffered(3))
        else:
            f_spec = pl.BlockSpec((M_pad, tk), f_idx)

        partials = pl.pallas_call(
            _gram_kernel_1op,
            out_shape=jax.ShapeDtypeStruct((n_split, M_pad, M_pad), jnp.float32),
            grid_spec=pltpu.PrefetchScalarGridSpec(
                num_scalar_prefetch=0,
                grid=(n_split, k_per),
                in_specs=[f_spec],
                out_specs=pl.BlockSpec((1, M_pad, M_pad), lambda s, k: (s, 0, 0)),
            ),
            compiler_params=pltpu.CompilerParams(
                dimension_semantics=("parallel", "arbitrary")),
            cost_estimate=pl.CostEstimate(
                flops=2 * M_pad * M_pad * K_pad,
                transcendentals=0,
                bytes_accessed=2 * M_pad * K_pad + 4 * n_split * M_pad * M_pad),
        )(f)
        g = jnp.sum(partials, axis=0)
    else:
        # ---- fallback: tiled (i, j, k) grid for very large M = N*C ----------
        # TODO(synk): exploit G = G^T (upper-triangle grid) when M_pad >= 2*tm.
        def mk_spec(shape, idx):
            if nk >= 3:
                return pl.BlockSpec(shape, idx, pipeline_mode=pl.Buffered(3))
            return pl.BlockSpec(shape, idx)

        g = pl.pallas_call(
            _gram_kernel_2op,
            out_shape=jax.ShapeDtypeStruct((M_pad, M_pad), jnp.float32),
            grid_spec=pltpu.PrefetchScalarGridSpec(
                num_scalar_prefetch=0,
                grid=(M_pad // tm, M_pad // tn, nk),
                in_specs=[mk_spec((tm, tk), lambda i, j, k: (i, k)),
                          mk_spec((tn, tk), lambda i, j, k: (j, k))],
                out_specs=pl.BlockSpec((tm, tn), lambda i, j, k: (i, j)),
            ),
            compiler_params=pltpu.CompilerParams(
                dimension_semantics=("parallel", "parallel", "arbitrary")),
            cost_estimate=pl.CostEstimate(
                flops=2 * M_pad * M_pad * K_pad,
                transcendentals=0,
                bytes_accessed=4 * M_pad * K_pad + 4 * M_pad * M_pad),
        )(f, f)

    # Normalize + crop padding in the (tiny) epilogue.
    return g[:M, :M] * inv_norm


@jax.jit
def _style_loss(x, target_gram):
    G = gram_matrix_pallas(x)
    # Tiny O(M^2) MSE epilogue in plain JAX (keeps the target out of the K loop).
    return jnp.mean((G - target_gram) ** 2)


class StyleLoss:
    """JAX/Pallas equivalent of the PyTorch StyleLoss module."""

    def __init__(self, target_feature):
        # Gram-only kernel for the detached target.
        self.target = jax.lax.stop_gradient(gram_matrix_pallas(target_feature))
        self.loss = None

    def __call__(self, x):
        # TODO(synk): storing self.loss as a traced attribute mirrors the
        # PyTorch module's statefulness; hoist it if composed under jit/vmap.
        self.loss = _style_loss(x, self.target)
        return x  # forward returns its input unchanged (loss stored on module)


def _gram_ref(x):
    a, b, c, d = x.shape
    f = x.reshape(a * b, c * d).astype(jnp.float32)
    return (f @ f.T) / (a * b * c * d)


if __name__ == "__main__":
    key = jax.random.PRNGKey(0)
    k_tgt, k_in = jax.random.split(key)

    # small shapes consistent with the module: N=2, C=4, H=W=16  (M=8, K=256)
    target_feature = jax.random.normal(k_tgt, (2, 4, 16, 16), dtype=jnp.float32)
    x = jax.random.normal(k_in, (2, 4, 16, 16), dtype=jnp.float32)

    module = StyleLoss(target_feature)
    out = module(x)
    out = jax.block_until_ready(out)
    loss = jax.block_until_ready(module.loss)

    # correctness check against a plain-JAX f32 reference of the PyTorch math
    G_ref_t = _gram_ref(target_feature)
    G_ref_x = _gram_ref(x)
    loss_ref = jnp.mean((G_ref_x - G_ref_t) ** 2)
    assert out.shape == x.shape and jnp.allclose(out, x)
    # bf16 MXU operands (f32 accumulation) -> tolerances loosened vs. pure f32.
    assert jnp.allclose(module.target, G_ref_t, atol=2e-3, rtol=2e-2)
    assert jnp.allclose(loss, loss_ref, atol=1e-5, rtol=5e-2)

    print("KERNEL_OK")
</pallas_src>

<mosaic_0001>
module attributes {stable_mosaic.version = 11 : i64} {
  func.func @_gram_kernel_1op(%arg0: i32, %arg1: i32, %arg2: memref<16x256xbf16, #tpu.memory_space<vmem>>, %arg3: memref<1x16x16xf32, #tpu.memory_space<vmem>>) attributes {dimension_semantics = [#tpu.dimension_semantics<parallel>, #tpu.dimension_semantics<arbitrary>], iteration_bounds = array<i64: 1, 1>, scalar_prefetch = 0 : i64, scratch_operands = 0 : i64, tpu.core_type = #tpu.core_type<tc>, window_params = [{transform_indices = @transform_0, window_bounds = array<i64: 16, 256>}, {transform_indices = @transform_1, window_bounds = array<i64: 1, 16, 16>}]} {
    %c0_i32 = arith.constant 0 : i32
    %0 = arith.cmpi eq, %arg1, %c0_i32 : i32
    %1 = arith.extui %0 : i1 to i32
    %c0_i32_0 = arith.constant 0 : i32
    %2 = arith.cmpi ne, %1, %c0_i32_0 : i32
    scf.if %2 {
      %cst_8 = arith.constant 0.000000e+00 : f32
      %9 = vector.broadcast %cst_8 : f32 to vector<1x16x16xf32>
      %c0_9 = arith.constant 0 : index
      %c0_10 = arith.constant 0 : index
      %c0_11 = arith.constant 0 : index
      %10 = vector.load %arg3[%c0_9, %c0_10, %c0_11] : memref<1x16x16xf32, #tpu.memory_space<vmem>>, vector<1x16x16xf32>
      tpu.vector_store %arg3[%c0_9, %c0_10, %c0_11], %9 {strides = array<i32>} : memref<1x16x16xf32, #tpu.memory_space<vmem>>, vector<1x16x16xf32>,
    } else {
    }
    %c0 = arith.constant 0 : index
    %c0_1 = arith.constant 0 : index
    %3 = vector.load %arg2[%c0, %c0_1] : memref<16x256xbf16, #tpu.memory_space<vmem>>, vector<16x256xbf16>
    %c0_2 = arith.constant 0 : index
    %c0_3 = arith.constant 0 : index
    %c0_4 = arith.constant 0 : index
    %4 = vector.load %arg3[%c0_2, %c0_3, %c0_4] : memref<1x16x16xf32, #tpu.memory_space<vmem>>, vector<1x16x16xf32>
    %cst = arith.constant dense<0.000000e+00> : vector<16x16xf32>
    %5 = tpu.matmul %3, %3, %cst {dimension_numbers = #tpu.dot_dimension_numbers<[1], [1], [0], [0], [0, 0, 1, 0], [], []>} : vector<16x256xbf16>, vector<16x256xbf16>, vector<16x16xf32> -> vector<16x16xf32>
    %6 = vector.shape_cast %5 : vector<16x16xf32> to vector<1x16x16xf32>
    %7 = arith.addf %4, %6 : vector<1x16x16xf32>
    %c0_5 = arith.constant 0 : index
    %c0_6 = arith.constant 0 : index
    %c0_7 = arith.constant 0 : index
    %8 = vector.load %arg3[%c0_5, %c0_6, %c0_7] : memref<1x16x16xf32, #tpu.memory_space<vmem>>, vector<1x16x16xf32>
    tpu.vector_store %arg3[%c0_5, %c0_6, %c0_7], %7 {strides = array<i32>} : memref<1x16x16xf32, #tpu.memory_space<vmem>>, vector<1x16x16xf32>,
    return
  }
  func.func @transform_0(%arg0: i32, %arg1: i32) -> (i32, i32) {
    %c1_i32 = arith.constant 1 : i32
    %0 = arith.muli %arg0, %c1_i32 : i32
    %1 = arith.addi %0, %arg1 : i32
    %c0_i32 = arith.constant 0 : i32
    %c0_i32_0 = arith.constant 0 : i32
    return %c0_i32, %1 : i32, i32
  }
  func.func @transform_1(%arg0: i32, %arg1: i32) -> (i32, i32, i32) {
    %c0_i32 = arith.constant 0 : i32
    %c0_i32_0 = arith.constant 0 : i32
    %c0_i32_1 = arith.constant 0 : i32
    return %arg0, %c0_i32, %c0_i32_0 : i32, i32, i32
  }
}

</mosaic_0001>

<llo_original>
// kernel: gram_matrix_pallas.1
$region0: #{gram_matrix_pallas.1}
  #allocation0 [shape = 'u32[]', space=smem, size = 0x4, offset = 0x4, fixed_abs, tag = 'smem constant byte address 0x4 - core index']
  #allocation1 [shape = 'u32[144,128]{1,0:T(1,128)}', space=vmem, size = 0x12000, scoped, tag = 'internal scratch']
  %s0 = inlined_call_operand.vmem [shape: bf16[16,256], index: 0, kind: input, shape index: {}]
  %s1 = inlined_call_operand.vmem [shape: f32[1,16,16], index: 1, kind: output, shape index: {}]
  %s2 = sld [smem:[#allocation0]]
  $region18: #{gram_matrix_pallas.1} parent=0
    _
  %s4 = ssub.s32 1, %s2
  %s5 = scalar_select 0, %s4, %s2
  // Predicated region
  $region2: #{gram_matrix_pallas.1} parent=0 // pred_check
    _
  $region3: #{gram_matrix_pallas.1} parent=0 // pred_check_branch
    %7 = sbr.rel (0) target = $region5
  $region4: #{gram_matrix_pallas.1} parent=0 // pred_region
    %s8 = sadd.s32 0, 0
    %s9 = smul.u32 2, %s8
    %p10 = scmp.lt.s32.totalorder %s9, 1
    %s11 = scalar_select %p10, %s9, 1
    %s12 = smul.addr %s11, 4
    %s13 = scalar_lea.vmem %s0, %s12
    %s14 = sadd.s32 0, 0
    %s15 = smul.u32 2, %s14
  $region5: #{gram_matrix_pallas.1} parent=0 // pred_fallthru
    _
  %s16 = sadd.s32 0, 0
  %s17 = smul.u32 2, %s16
  %p18 = scmp.lt.s32.totalorder %s17, 1
  %s19 = scalar_select %p18, %s17, 1
  %s20 = smul.addr %s19, 4
  %s21 = scalar_lea.vmem %s0, %s20
  %s22 = sadd.s32 0, 0
  %s23 = smul.u32 2, %s22
  %p24 = scmp.lt.s32.totalorder %s23, 1
  %s25 = scalar_select %p24, %s23, 1
  %s26 = smul.addr %s25, 4
  %s27 = scalar_lea.vmem %s0, %s26
  %s28 = sadd.s32 0, 0
  %s29 = smul.u32 2, %s28
  %p31 = scmp.eq.s32.totalorder 0, 0
  // Predicated region
  $region6: #{gram_matrix_pallas.1} parent=0 // pred_check
    %p32 = pneg %p31
  $region7: #{gram_matrix_pallas.1} parent=0 // pred_check_branch
    %34 = sbr.rel (%p32) target = $region9
  $region8: #{gram_matrix_pallas.1} parent=0 // pred_region
    %vm35 = vcmask 130048
    %36 = vst.msk [vmem:[%s1] sm:$0xff] %vm35, 0.0
    %37 = vst.msk [vmem:[%s1 + $0x8] sm:$0xff] %vm35, 0.0
  $region9: #{gram_matrix_pallas.1} parent=0 // pred_fallthru
    _
  %v38 = vld [vmem:[%s27] sm:$0xff]
  %v39 = vld [vmem:[%s27 + $0x8] sm:$0xff]
  %v40 = vld [vmem:[%s1] sm:$0xff]
  %v41 = vld [vmem:[%s1 + $0x8] sm:$0xff]
  %v44 = vunpack.c.l.b16 %v38
  %v45 = vunpack.c.h.b16 %v38
  %v46 = vunpack.c.l.b16 %v39
  %v47 = vunpack.c.h.b16 %v39
  %v48 = vpack.c.b16 %v46, %v44
  %v49 = vpack.c.b16 %v47, %v45
  %52 = vmatprep.subr.bf16.mxu0 %v49
  %53 = vmatpush1.bf16.xpose.msra.mxu0 %v48
  %54 = vmatprep.subr.bf16.mxu0 0
  %55 = vmatpush1.bf16.xpose.msra.mxu0 0
  %56 = vmatprep.subr.bf16.mxu0 0
  %57 = vmatpush1.bf16.xpose.msra.mxu0 0
  %58 = vmatprep.subr.bf16.mxu0 0
  %59 = vmatpush1.bf16.xpose.msra.mxu0 0
  %60 = vmatprep.subr.bf16.mxu0 0
  %61 = vmatpush1.bf16.xpose.msra.mxu0 0
  %62 = vmatprep.subr.bf16.mxu0 0
  %63 = vmatpush1.bf16.xpose.msra.mxu0 0
  %64 = vmatprep.subr.bf16.mxu0 0
  %65 = vmatpush1.bf16.xpose.msra.mxu0 0
  %66 = vmatprep.subr.bf16.mxu0 0
  %67 = vmatpush1.bf16.xpose.msra.mxu0 0
  %68 = vmatprep.subr.bf16.mxu0 0
  %69 = vmatpush1.bf16.xpose.msra.mxu0 0
  %70 = vmatprep.subr.bf16.mxu0 0
  %71 = vmatpush1.bf16.xpose.msra.mxu0 0
  %72 = vmatprep.subr.bf16.mxu0 0
  %73 = vmatpush1.bf16.xpose.msra.mxu0 0
  %74 = vmatprep.subr.bf16.mxu0 0
  %75 = vmatpush1.bf16.xpose.msra.mxu0 0
  %76 = vmatprep.subr.bf16.mxu0 0
  %77 = vmatpush1.bf16.xpose.msra.mxu0 0
  %78 = vmatprep.subr.bf16.mxu0 0
  %79 = vmatpush1.bf16.xpose.msra.mxu0 0
  %80 = vmatprep.subr.bf16.mxu0 0
  %81 = vmatpush1.bf16.xpose.msra.mxu0 0
  %82 = vmatprep.subr.bf16.mxu0 0
  %83 = vmatpush1.bf16.xpose.msra.mxu0 0
  %84 = vmatprep.mubr.bf16.mxu0 %v49
  %85 = vmatmul.mubr.bf16.gmra.mrb[0].mxu0 %v48
  %v86 = vpop.f32.mrb[0].mxu0
  %v87 = vadd.f32 0.0, %v86
  %v88 = vpop.f32.mrb[0].mxu0
  %v89 = vpop.f32.mrb[0].mxu0
  %v90 = vadd.f32 0.0, %v89
  %v91 = vpop.f32.mrb[0].mxu0
  %92 = vdwg.mxu0
  %v93 = vadd.f32 %v40, %v87
  %v94 = vadd.f32 %v41, %v90
  %vm95 = vcmask 130048
  %96 = vst.msk [vmem:[%s1] sm:$0xff] %vm95, %v93
  %97 = vst.msk [vmem:[%s1 + $0x8] sm:$0xff] %vm95, %v94
  // Predicated region
  $region10: #{gram_matrix_pallas.1} parent=0 // pred_check
    _
  $region11: #{gram_matrix_pallas.1} parent=0 // pred_check_branch
    %99 = sbr.rel (0) target = $region13
  $region12: #{gram_matrix_pallas.1} parent=0 // pred_region
    _
  $region13: #{gram_matrix_pallas.1} parent=0 // pred_fallthru
    _
  // Predicated region
  $region14: #{gram_matrix_pallas.1} parent=0 // pred_check
    _
  $region15: #{gram_matrix_pallas.1} parent=0 // pred_check_branch
    %101 = sbr.rel (0) target = $region17
  $region16: #{gram_matrix_pallas.1} parent=0 // pred_region
    _
  $region17: #{gram_matrix_pallas.1} parent=0 // pred_fallthru
    _

</llo_original>
